<compile_context>
chip_gen: v7x
topology: tpu7x:2x2x1
jax: 0.10.0
libtpu: 0.0.40
codegen_flags: <defaults>
</compile_context>

<pallas_src>
import jax
import jax.numpy as jnp
from jax.experimental import pallas as pl
from jax.experimental.pallas import tpu as pltpu
import numpy as np


def cp_transition_kernel(w1_ref, w2_ref, e_ref, out_ref, w2e_ref):
    """out[i, a*S + j] = sum_r w1[i, r] * w2[j, r] * e[a, r].

    w1_ref, w2_ref: [S, R]; e_ref: [A, R]; out_ref: [S, A*S];
    w2e_ref: VMEM scratch [A*S, R].
    """
    w2 = w2_ref[...]                    # [S, R]
    e = e_ref[...]                      # [A, R]

    state_dim = w2.shape[0]
    act_dim = e.shape[0]

    # Build the stacked scaled factor directly in the scratch slab:
    #   w2e[a*S + j, r] = e[a, r] * w2[j, r]
    # act_dim is a small static Python int, so this stays fully unrolled and
    # each store hits a statically aligned [S, R] slice (no concat relayout).
    for act in range(act_dim):
        w2e_ref[pl.ds(act * state_dim, state_dim), :] = w2 * e[act:act + 1, :]

    # Single lane-dense MXU matmul contracting the rank dimension:
    #   [S, R] x [A*S, R]^T -> [S, A*S]   (32 x 128 at the example sizes)
    out_ref[...] = jax.lax.dot_general(
        w1_ref[...], w2e_ref[...], (((1,), (1,)), ((), ())),
        preferred_element_type=jnp.float32)


def embedded_transition_forward(w1, w2, e, a=None):
    """Pallas forward matching EmbeddedTransitionModel.forward.

    w1: [1, S, 1, R], w2: [1, 1, S, R], e: [A, 1, 1, R] (torch parameter
    shapes). `a` is accepted for signature parity but is unused, exactly as in
    the PyTorch module. Returns w_a with shape [A, S, S].
    """
    del a  # unused by the module's forward
    state_dim = w1.shape[1]
    rank = w1.shape[3]
    act_dim = e.shape[0]

    w1_2d = w1.reshape(state_dim, rank)      # [S, R]
    w2_2d = w2.reshape(state_dim, rank)      # [S, R]
    e_2d = e.reshape(act_dim, rank)          # [A, R]

    vmem = pl.BlockSpec(memory_space=pltpu.MemorySpace.VMEM)
    stacked = pl.pallas_call(
        cp_transition_kernel,
        out_shape=jax.ShapeDtypeStruct((state_dim, act_dim * state_dim),
                                       jnp.float32),
        in_specs=[vmem, vmem, vmem],
        out_specs=vmem,
        scratch_shapes=[pltpu.VMEM((act_dim * state_dim, rank), jnp.float32)],
    )(w1_2d, w2_2d, e_2d)

    # stacked[i, a*S + j] -> w_a[a, i, j]  (layout plumbing in the wrapper)
    return stacked.reshape(state_dim, act_dim, state_dim).transpose(1, 0, 2)


def ref_forward(w1, w2, e):
    """Pure-JAX mirror of the PyTorch semantics for verification."""
    return jnp.sum(w1 * w2 * e, axis=-1)     # broadcast -> [A, S, S, R] -> sum


if __name__ == "__main__":
    state_dim, act_dim, rank = 32, 4, 10

    key = jax.random.PRNGKey(0)
    k_w1, k_w2, k_e = jax.random.split(key, 3)

    # Deterministic xavier_normal-style init matching torch's fan computation
    # for the original 4-D parameter shapes.
    std_w1 = np.sqrt(2.0 / (state_dim * rank + 1 * rank))   # w1: [1,S,1,R]
    std_w2 = np.sqrt(2.0 / (1 * rank + state_dim * rank))   # w2: [1,1,S,R]
    std_e = np.sqrt(2.0 / (1 * rank + act_dim * rank))      # e : [A,1,1,R]
    w1 = std_w1 * jax.random.normal(k_w1, (1, state_dim, 1, rank), jnp.float32)
    w2 = std_w2 * jax.random.normal(k_w2, (1, 1, state_dim, rank), jnp.float32)
    e = std_e * jax.random.normal(k_e, (act_dim, 1, 1, rank), jnp.float32)

    # `transition` property calls forward(eye(act_dim)); forward ignores `a`.
    a = jnp.eye(act_dim, dtype=jnp.float32)

    out = embedded_transition_forward(w1, w2, e, a)
    out = jax.block_until_ready(out)

    ref = jax.block_until_ready(ref_forward(w1, w2, e))
    np.testing.assert_allclose(np.asarray(out), np.asarray(ref),
                               rtol=1e-5, atol=1e-6)
    assert out.shape == (act_dim, state_dim, state_dim)

    print("KERNEL_OK")
</pallas_src>

<mosaic_0001>
module attributes {stable_mosaic.version = 11 : i64} {
  func.func @cp_transition_kernel(%arg0: memref<32x10xf32, #tpu.memory_space<vmem>>, %arg1: memref<32x10xf32, #tpu.memory_space<vmem>>, %arg2: memref<4x10xf32, #tpu.memory_space<vmem>>, %arg3: memref<32x128xf32, #tpu.memory_space<vmem>>, %arg4: memref<128x10xf32, #tpu.memory_space<vmem>>) attributes {dimension_semantics = [], scalar_prefetch = 0 : i64, scratch_operands = 1 : i64, tpu.core_type = #tpu.core_type<tc>} {
    %c0 = arith.constant 0 : index
    %c0_0 = arith.constant 0 : index
    %0 = vector.load %arg1[%c0, %c0_0] : memref<32x10xf32, #tpu.memory_space<vmem>>, vector<32x10xf32>
    %c0_1 = arith.constant 0 : index
    %c0_2 = arith.constant 0 : index
    %1 = vector.load %arg2[%c0_1, %c0_2] : memref<4x10xf32, #tpu.memory_space<vmem>>, vector<4x10xf32>
    %2 = vector.extract_strided_slice %1 {offsets = [0, 0], sizes = [1, 10], strides = [1, 1]} : vector<4x10xf32> to vector<1x10xf32>
    %3 = vector.broadcast %2 : vector<1x10xf32> to vector<32x10xf32>
    %4 = arith.mulf %0, %3 : vector<32x10xf32>
    %c0_3 = arith.constant 0 : index
    %c0_4 = arith.constant 0 : index
    %5 = vector.load %arg4[%c0_3, %c0_4] : memref<128x10xf32, #tpu.memory_space<vmem>>, vector<32x10xf32>
    tpu.vector_store %arg4[%c0_3, %c0_4], %4 {strides = array<i32>} : memref<128x10xf32, #tpu.memory_space<vmem>>, vector<32x10xf32>,
    %6 = vector.extract_strided_slice %1 {offsets = [1, 0], sizes = [1, 10], strides = [1, 1]} : vector<4x10xf32> to vector<1x10xf32>
    %7 = vector.broadcast %6 : vector<1x10xf32> to vector<32x10xf32>
    %8 = arith.mulf %0, %7 : vector<32x10xf32>
    %c32 = arith.constant 32 : index
    %c0_5 = arith.constant 0 : index
    %9 = vector.load %arg4[%c32, %c0_5] : memref<128x10xf32, #tpu.memory_space<vmem>>, vector<32x10xf32>
    tpu.vector_store %arg4[%c32, %c0_5], %8 {strides = array<i32>} : memref<128x10xf32, #tpu.memory_space<vmem>>, vector<32x10xf32>,
    %10 = vector.extract_strided_slice %1 {offsets = [2, 0], sizes = [1, 10], strides = [1, 1]} : vector<4x10xf32> to vector<1x10xf32>
    %11 = vector.broadcast %10 : vector<1x10xf32> to vector<32x10xf32>
    %12 = arith.mulf %0, %11 : vector<32x10xf32>
    %c64 = arith.constant 64 : index
    %c0_6 = arith.constant 0 : index
    %13 = vector.load %arg4[%c64, %c0_6] : memref<128x10xf32, #tpu.memory_space<vmem>>, vector<32x10xf32>
    tpu.vector_store %arg4[%c64, %c0_6], %12 {strides = array<i32>} : memref<128x10xf32, #tpu.memory_space<vmem>>, vector<32x10xf32>,
    %14 = vector.extract_strided_slice %1 {offsets = [3, 0], sizes = [1, 10], strides = [1, 1]} : vector<4x10xf32> to vector<1x10xf32>
    %15 = vector.broadcast %14 : vector<1x10xf32> to vector<32x10xf32>
    %16 = arith.mulf %0, %15 : vector<32x10xf32>
    %c96 = arith.constant 96 : index
    %c0_7 = arith.constant 0 : index
    %17 = vector.load %arg4[%c96, %c0_7] : memref<128x10xf32, #tpu.memory_space<vmem>>, vector<32x10xf32>
    tpu.vector_store %arg4[%c96, %c0_7], %16 {strides = array<i32>} : memref<128x10xf32, #tpu.memory_space<vmem>>, vector<32x10xf32>,
    %c0_8 = arith.constant 0 : index
    %c0_9 = arith.constant 0 : index
    %18 = vector.load %arg0[%c0_8, %c0_9] : memref<32x10xf32, #tpu.memory_space<vmem>>, vector<32x10xf32>
    %c0_10 = arith.constant 0 : index
    %c0_11 = arith.constant 0 : index
    %19 = vector.load %arg4[%c0_10, %c0_11] : memref<128x10xf32, #tpu.memory_space<vmem>>, vector<128x10xf32>
    %cst = arith.constant dense<0.000000e+00> : vector<32x128xf32>
    %20 = tpu.matmul %18, %19, %cst {dimension_numbers = #tpu.dot_dimension_numbers<[1], [1], [0], [0], [0, 0, 1, 0], [], []>} : vector<32x10xf32>, vector<128x10xf32>, vector<32x128xf32> -> vector<32x128xf32>
    %c0_12 = arith.constant 0 : index
    %c0_13 = arith.constant 0 : index
    %21 = vector.load %arg3[%c0_12, %c0_13] : memref<32x128xf32, #tpu.memory_space<vmem>>, vector<32x128xf32>
    tpu.vector_store %arg3[%c0_12, %c0_13], %20 {strides = array<i32>} : memref<32x128xf32, #tpu.memory_space<vmem>>, vector<32x128xf32>,
    return
  }
}

</mosaic_0001>

<llo_original>
// kernel: tpu_custom_call.1
$region0: #{tpu_custom_call.1}
  #allocation0 [shape = 'u32[]', space=smem, size = 0x4, offset = 0x4, fixed_abs, tag = 'smem constant byte address 0x4 - core index']
  #allocation1 [shape = 'u32[144,128]{1,0:T(1,128)}', space=vmem, size = 0x12000, scoped, tag = 'internal scratch']
  #allocation2 [shape = 'f32[128,10]{1,0:T(8,128)}', space=vmem, size = 0x10000, scoped, tag = 'scratch operand']
  %s0 = inlined_call_operand.vmem [shape: f32[32,10], index: 0, kind: input, shape index: {}]
  %s1 = inlined_call_operand.vmem [shape: f32[32,10], index: 1, kind: input, shape index: {}]
  %s2 = inlined_call_operand.vmem [shape: f32[4,10], index: 2, kind: input, shape index: {}]
  %s3 = inlined_call_operand.hbm [shape: f32[32,128], index: 3, kind: output, shape index: {}]
  %s4 = sld [smem:[#allocation0]]
  $region22: #{tpu_custom_call.1} parent=0
    _
  %s6 = ssub.s32 1, %s4
  %s7 = scalar_select 0, %s6, %s4
  $region1: #{tpu_custom_call.1} parent=0
    #allocation3 [shape = 'u8[16384]{0}', space=vmem, size = 0x4000, scoped, tag = 'output window, operand 0, single buffered']
    #allocation4 [shape = 's32[1]{0}', space=sflag, size = 0x4, scoped, tag = 'scoped memory for tpu_custom_call.1']
    %8 = vsyncpa [#allocation4], 0
    // Predicated region
    $region2: #{tpu_custom_call.1} parent=1 // pred_check
      _
    $region3: #{tpu_custom_call.1} parent=1 // pred_check_branch
      %10 = sbr.rel (0) target = $region5
    $region4: #{tpu_custom_call.1} parent=1 // pred_region
      _
    $region5: #{tpu_custom_call.1} parent=1 // pred_fallthru
      _
    // Predicated region
    $region6: #{tpu_custom_call.1} parent=1 // pred_check
      _
    $region7: #{tpu_custom_call.1} parent=1 // pred_check_branch
      %12 = sbr.rel (0) target = $region9
    $region8: #{tpu_custom_call.1} parent=1 // pred_region
      _
    $region9: #{tpu_custom_call.1} parent=1 // pred_fallthru
      _
    // Predicated region
    $region10: #{tpu_custom_call.1} parent=1 // pred_check
      _
    $region11: #{tpu_custom_call.1} parent=1 // pred_check_branch
      %14 = sbr.rel (0) target = $region13
    $region12: #{tpu_custom_call.1} parent=1 // pred_region
      _
    $region13: #{tpu_custom_call.1} parent=1 // pred_fallthru
      _
    %v15 = vld [vmem:[%s1] sm:$0xff]
    %v16 = vld [vmem:[%s1 + $0x8] sm:$0xff]
    %v17 = vld [vmem:[%s1 + $0x10] sm:$0xff]
    %v18 = vld [vmem:[%s1 + $0x18] sm:$0xff]
    %v19 = vld [vmem:[%s2] sm:$0xf]
    %v20 = vlaneseq
    %v21 = vshrl.u32 %v20, 7
    %v22 = vsub.s32 0, %v21
    %v23 = vrot.slane %v19, %v22
    %v24 = vmul.f32 %v15, %v23
    %v25 = vmul.f32 %v16, %v23
    %v26 = vmul.f32 %v17, %v23
    %v27 = vmul.f32 %v18, %v23
    %vm28 = vcmask 80896
    %29 = vst.msk [vmem:[#allocation2] sm:$0xff] %vm28, %v24
    %30 = vst.msk [vmem:[#allocation2 + $0x8] sm:$0xff] %vm28, %v25
    %31 = vst.msk [vmem:[#allocation2 + $0x10] sm:$0xff] %vm28, %v26
    %32 = vst.msk [vmem:[#allocation2 + $0x18] sm:$0xff] %vm28, %v27
    %v33 = vlaneseq
    %v34 = vshrl.u32 %v33, 7
    %v35 = vsub.s32 1, %v34
    %v36 = vrot.slane %v19, %v35
    %v37 = vmul.f32 %v15, %v36
    %v38 = vmul.f32 %v16, %v36
    %v39 = vmul.f32 %v17, %v36
    %v40 = vmul.f32 %v18, %v36
    %41 = vst.msk [vmem:[#allocation2 + $0x20] sm:$0xff] %vm28, %v37
    %42 = vst.msk [vmem:[#allocation2 + $0x28] sm:$0xff] %vm28, %v38
    %43 = vst.msk [vmem:[#allocation2 + $0x30] sm:$0xff] %vm28, %v39
    %44 = vst.msk [vmem:[#allocation2 + $0x38] sm:$0xff] %vm28, %v40
    %v45 = vlaneseq
    %v46 = vshrl.u32 %v45, 7
    %v47 = vsub.s32 2, %v46
    %v48 = vrot.slane %v19, %v47
    %v49 = vmul.f32 %v15, %v48
    %v50 = vmul.f32 %v16, %v48
    %v51 = vmul.f32 %v17, %v48
    %v52 = vmul.f32 %v18, %v48
    %53 = vst.msk [vmem:[#allocation2 + $0x40] sm:$0xff] %vm28, %v49
    %54 = vst.msk [vmem:[#allocation2 + $0x48] sm:$0xff] %vm28, %v50
    %55 = vst.msk [vmem:[#allocation2 + $0x50] sm:$0xff] %vm28, %v51
    %56 = vst.msk [vmem:[#allocation2 + $0x58] sm:$0xff] %vm28, %v52
    %v57 = vlaneseq
    %v58 = vshrl.u32 %v57, 7
    %v59 = vsub.s32 3, %v58
    %v60 = vrot.slane %v19, %v59
    %v61 = vmul.f32 %v15, %v60
    %v62 = vmul.f32 %v16, %v60
    %v63 = vmul.f32 %v17, %v60
    %v64 = vmul.f32 %v18, %v60
    %65 = vst.msk [vmem:[#allocation2 + $0x60] sm:$0xff] %vm28, %v61
    %66 = vst.msk [vmem:[#allocation2 + $0x68] sm:$0xff] %vm28, %v62
    %67 = vst.msk [vmem:[#allocation2 + $0x70] sm:$0xff] %vm28, %v63
    %68 = vst.msk [vmem:[#allocation2 + $0x78] sm:$0xff] %vm28, %v64
    %v69 = vld [vmem:[%s0] sm:$0xff]
    %v70 = vld [vmem:[%s0 + $0x8] sm:$0xff]
    %v71 = vld [vmem:[%s0 + $0x10] sm:$0xff]
    %v72 = vld [vmem:[%s0 + $0x18] sm:$0xff]
    %v73 = vld [vmem:[#allocation2] sm:$0xff]
    %v74 = vld [vmem:[#allocation2 + $0x8] sm:$0xff]
    %v75 = vld [vmem:[#allocation2 + $0x10] sm:$0xff]
    %v76 = vld [vmem:[#allocation2 + $0x18] sm:$0xff]
    %v77 = vld [vmem:[#allocation2 + $0x20] sm:$0xff]
    %v78 = vld [vmem:[#allocation2 + $0x28] sm:$0xff]
    %v79 = vld [vmem:[#allocation2 + $0x30] sm:$0xff]
    %v80 = vld [vmem:[#allocation2 + $0x38] sm:$0xff]
    %v81 = vld [vmem:[#allocation2 + $0x40] sm:$0xff]
    %v82 = vld [vmem:[#allocation2 + $0x48] sm:$0xff]
    %v83 = vld [vmem:[#allocation2 + $0x50] sm:$0xff]
    %v84 = vld [vmem:[#allocation2 + $0x58] sm:$0xff]
    %v85 = vld [vmem:[#allocation2 + $0x60] sm:$0xff]
    %v86 = vld [vmem:[#allocation2 + $0x68] sm:$0xff]
    %v87 = vld [vmem:[#allocation2 + $0x70] sm:$0xff]
    %v88 = vld [vmem:[#allocation2 + $0x78] sm:$0xff]
    %v90 = vsel %vm28, %v69, 0
    %v93 = vsel %vm28, %v70, 0
    %v96 = vsel %vm28, %v71, 0
    %v99 = vsel %vm28, %v72, 0
    %v102 = vsel %vm28, %v73, 0
    %v105 = vsel %vm28, %v74, 0
    %v108 = vsel %vm28, %v75, 0
    %v111 = vsel %vm28, %v76, 0
    %v114 = vsel %vm28, %v77, 0
    %v117 = vsel %vm28, %v78, 0
    %v120 = vsel %vm28, %v79, 0
    %v123 = vsel %vm28, %v80, 0
    %v126 = vsel %vm28, %v81, 0
    %v129 = vsel %vm28, %v82, 0
    %v132 = vsel %vm28, %v83, 0
    %v135 = vsel %vm28, %v84, 0
    %v138 = vsel %vm28, %v85, 0
    %v141 = vsel %vm28, %v86, 0
    %v144 = vsel %vm28, %v87, 0
    %v147 = vsel %vm28, %v88, 0
    %149 = vmatprep.subr.mxu0 0.0
    %150 = vmatpush1.xpose.msra.mxu0 %v102
    %151 = vmatprep.subr.mxu0 0.0
    %152 = vmatpush1.xpose.msra.mxu0 %v105
    %153 = vmatprep.subr.mxu0 0.0
    %154 = vmatpush1.xpose.msra.mxu0 %v108
    %155 = vmatprep.subr.mxu0 0.0
    %156 = vmatpush1.xpose.msra.mxu0 %v111
    %157 = vmatprep.subr.mxu0 0.0
    %158 = vmatpush1.xpose.msra.mxu0 %v114
    %159 = vmatprep.subr.mxu0 0.0
    %160 = vmatpush1.xpose.msra.mxu0 %v117
    %161 = vmatprep.subr.mxu0 0.0
    %162 = vmatpush1.xpose.msra.mxu0 %v120
    %163 = vmatprep.subr.mxu0 0.0
    %164 = vmatpush1.xpose.msra.mxu0 %v123
    %165 = vmatprep.subr.mxu0 0.0
    %166 = vmatpush1.xpose.msra.mxu0 %v126
    %167 = vmatprep.subr.mxu0 0.0
    %168 = vmatpush1.xpose.msra.mxu0 %v129
    %169 = vmatprep.subr.mxu0 0.0
    %170 = vmatpush1.xpose.msra.mxu0 %v132
    %171 = vmatprep.subr.mxu0 0.0
    %172 = vmatpush1.xpose.msra.mxu0 %v135
    %173 = vmatprep.subr.mxu0 0.0
    %174 = vmatpush1.xpose.msra.mxu0 %v138
    %175 = vmatprep.subr.mxu0 0.0
    %176 = vmatpush1.xpose.msra.mxu0 %v141
    %177 = vmatprep.subr.mxu0 0.0
    %178 = vmatpush1.xpose.msra.mxu0 %v144
    %179 = vmatprep.subr.mxu0 0.0
    %180 = vmatpush1.xpose.msra.mxu0 %v147
    %181 = vmatprep.subr.mxu0 0.0
    %182 = vmatpush1.xpose.msra.mxu0 0.0
    %183 = vmatprep.subr.mxu0 0.0
    %184 = vmatpush1.xpose.msra.mxu0 0.0
    %185 = vmatprep.subr.mxu0 0.0
    %186 = vmatpush1.xpose.msra.mxu0 0.0
    %187 = vmatprep.subr.mxu0 0.0
    %188 = vmatpush1.xpose.msra.mxu0 0.0
    %189 = vmatprep.subr.mxu0 0.0
    %190 = vmatpush1.xpose.msra.mxu0 0.0
    %191 = vmatprep.subr.mxu0 0.0
    %192 = vmatpush1.xpose.msra.mxu0 0.0
    %193 = vmatprep.subr.mxu0 0.0
    %194 = vmatpush1.xpose.msra.mxu0 0.0
    %195 = vmatprep.subr.mxu0 0.0
    %196 = vmatpush1.xpose.msra.mxu0 0.0
    %197 = vmatprep.subr.mxu0 0.0
    %198 = vmatpush1.xpose.msra.mxu0 0.0
    %199 = vmatprep.subr.mxu0 0.0
    %200 = vmatpush1.xpose.msra.mxu0 0.0
    %201 = vmatprep.subr.mxu0 0.0
    %202 = vmatpush1.xpose.msra.mxu0 0.0
    %203 = vmatprep.subr.mxu0 0.0
    %204 = vmatpush1.xpose.msra.mxu0 0.0
    %205 = vmatprep.subr.mxu0 0.0
    %206 = vmatpush1.xpose.msra.mxu0 0.0
    %207 = vmatprep.subr.mxu0 0.0
    %208 = vmatpush1.xpose.msra.mxu0 0.0
    %209 = vmatprep.subr.mxu0 0.0
    %210 = vmatpush1.xpose.msra.mxu0 0.0
    %211 = vmatprep.subr.mxu0 0.0
    %212 = vmatpush1.xpose.msra.mxu0 0.0
    %213 = vmatprep.mubr.f32.mxu0 0.0
    %214 = vmatmul.mubr.f32.gmra.mrb[0].mxu0 %v90
    %v215 = vpop.f32.mrb[0].mxu0
    %v216 = vadd.f32 0.0, %v215
    %v217 = vpop.f32.mrb[0].mxu0
    %218 = vmatprep.mubr.f32.mxu0 0.0
    %219 = vmatmul.mubr.f32.gmra.mrb[0].mxu0 %v93
    %v220 = vpop.f32.mrb[0].mxu0
    %v221 = vadd.f32 0.0, %v220
    %v222 = vpop.f32.mrb[0].mxu0
    %223 = vmatprep.mubr.f32.mxu0 0.0
    %224 = vmatmul.mubr.f32.gmra.mrb[0].mxu0 %v96
    %v225 = vpop.f32.mrb[0].mxu0
    %v226 = vadd.f32 0.0, %v225
    %v227 = vpop.f32.mrb[0].mxu0
    %228 = vmatprep.mubr.f32.mxu0 0.0
    %229 = vmatmul.mubr.f32.gmra.mrb[0].mxu0 %v99
    %v230 = vpop.f32.mrb[0].mxu0
    %v231 = vadd.f32 0.0, %v230
    %v232 = vpop.f32.mrb[0].mxu0
    %233 = vdwg.mxu0
    %234 = vst [vmem:[#allocation3] sm:$0xff] %v216
    %235 = vst [vmem:[#allocation3 + $0x8] sm:$0xff] %v221
    %236 = vst [vmem:[#allocation3 + $0x10] sm:$0xff] %v226
    %237 = vst [vmem:[#allocation3 + $0x18] sm:$0xff] %v231
    // Predicated region
    $region14: #{tpu_custom_call.1} parent=1 // pred_check
      _
    $region15: #{tpu_custom_call.1} parent=1 // pred_check_branch
      %239 = sbr.rel (0) target = $region17
    $region16: #{tpu_custom_call.1} parent=1 // pred_region
      %s241 = ssub.s32 512, 512
      %242 = vsyncadd [#allocation4], %s241
      %s243 = sshll.u32 [#allocation3], 4
      %s244 = int_to_ptr.vmem [resolvable:$true] %s243
      %249 = dma.vmem_to_hbm [thread:$0]  %s244, 512, %s3, [#allocation4], 128, 128, 8
    $region17: #{tpu_custom_call.1} parent=1 // pred_fallthru
      _
    // Predicated region
    $region18: #{tpu_custom_call.1} parent=1 // pred_check
      _
    $region19: #{tpu_custom_call.1} parent=1 // pred_check_branch
      %251 = sbr.rel (0) target = $region21
    $region20: #{tpu_custom_call.1} parent=1 // pred_region
      %252 = dma.done [#allocation4], 512
    $region21: #{tpu_custom_call.1} parent=1 // pred_fallthru
      _
    %253 = vsyncpa [#allocation4], 1

</llo_original>
